<compile_context>
chip_gen: v5e
topology: v5e:2x2
jax: 0.10.0
libtpu: 0.0.40
codegen_flags: <defaults>
</compile_context>

<pallas_src>
import functools

import jax
import jax.numpy as jnp
from jax.experimental import pallas as pl
from jax.experimental.pallas import tpu as pltpu


LEAKY_SLOPE = 0.01           # nn.LeakyReLU() default negative_slope
LANE = 128                   # vreg lane width
DEFAULT_TILE_PIXELS = 1024   # pooled pixels per grid step (multiple of 128)


def _round_up(a, m):
    return ((a + m - 1) // m) * m


def _pointnet_kernel(x_ref, *rest, num_layers, k, tm):
    """x_ref: (C_in, k*tm) bf16 -- the k pooling offsets of this tile's tm pooled
    pixels are concatenated along lanes (offset r owns lanes [r*tm, (r+1)*tm)).
    rest = (w_0, ..., w_{L-1}, o_ref); w_l: (C_out_l, C_in_l) f32; o_ref: (C_out, tm) f32."""
    w_refs = rest[:num_layers]
    o_ref = rest[num_layers]

    h = x_ref[...]                                                 # (C_in, k*tm) bf16
    for l in range(num_layers):
        w = w_refs[l][...].astype(jnp.bfloat16)                    # tiny, resident
        h = jnp.dot(w, h, preferred_element_type=jnp.float32)      # bf16 MXU, f32 acc
        h = jnp.maximum(h, LEAKY_SLOPE * h)                        # LeakyReLU (VPU, f32)
        if l + 1 < num_layers:
            h = h.astype(jnp.bfloat16)                             # bf16 into next dot

    # MaxPool2d((1, k)): max over the k lane-aligned tm-wide slices.
    acc = h[:, :tm]
    for r in range(1, k):
        acc = jnp.maximum(acc, h[:, r * tm:(r + 1) * tm])
    o_ref[...] = acc.astype(o_ref.dtype)


def pointnet_conv(x_nchw, weights, k_size=None, tile_pixels=DEFAULT_TILE_PIXELS):
    """x_nchw: (N, C_in, H, W) f32.
    weights: list of (C_out_l, C_in_l) f32 matrices (torch Conv2d weight, 1x1 squeezed)."""
    N, C_in, H, W = x_nchw.shape
    num_layers = len(weights)
    C_out = int(weights[-1].shape[0])
    k = 1 if k_size is None else int(k_size)
    assert W % k == 0, "W must be divisible by k_size"
    W_out = W // k
    NP_out = N * H * W_out

    # Tile size selection (pooled pixels per grid step, multiple of LANE).
    tile_pixels = max(LANE, (int(tile_pixels) // LANE) * LANE)
    np_min = _round_up(NP_out, LANE)
    tm = min(tile_pixels, np_min)
    # Megacore: ensure >= 2 grid steps when there is enough work (v7x: 2 TCs).
    if np_min >= 2 * LANE and np_min // tm < 2:
        tm = max(LANE, ((np_min // 2) // LANE) * LANE)
    np_pad = _round_up(np_min, tm)
    num_tiles = np_pad // tm

    # Layout plumbing (wrapper side):
    #   (N, C, H, W) -> (C_in, NP_out, k) -> pad pixels -> (C_in, num_tiles, k, tm)
    #   -> (C_in, num_tiles*k*tm), bf16.  Pooling offset r = w % k sits in tile-local
    #   lane groups so the in-kernel max is over aligned 128-lane slices.
    x = x_nchw.astype(jnp.bfloat16)
    x = x.reshape(N, C_in, H, W_out, k)
    x = jnp.transpose(x, (1, 0, 2, 3, 4)).reshape(C_in, NP_out, k)
    if np_pad != NP_out:
        x = jnp.pad(x, ((0, 0), (0, np_pad - NP_out), (0, 0)))
    x = x.reshape(C_in, num_tiles, tm, k)
    x = jnp.transpose(x, (0, 1, 3, 2)).reshape(C_in, num_tiles * k * tm)

    kernel = functools.partial(_pointnet_kernel, num_layers=num_layers, k=k, tm=tm)

    in_specs = [pl.BlockSpec((C_in, k * tm), lambda i: (0, i))]
    for w in weights:
        f_out, f_in = int(w.shape[0]), int(w.shape[1])
        in_specs.append(pl.BlockSpec((f_out, f_in), lambda i: (0, 0)))  # resident in VMEM

    flops = 2 * (N * H * W) * sum(int(w.shape[0]) * int(w.shape[1]) for w in weights)
    bytes_accessed = (2 * int(x.size)
                      + 4 * sum(int(w.size) for w in weights)
                      + 4 * C_out * np_pad)

    out = pl.pallas_call(
        kernel,
        out_shape=jax.ShapeDtypeStruct((C_out, np_pad), jnp.float32),
        grid_spec=pltpu.PrefetchScalarGridSpec(
            num_scalar_prefetch=0,
            grid=(num_tiles,),
            in_specs=in_specs,
            out_specs=pl.BlockSpec((C_out, tm), lambda i: (0, i)),
        ),
        compiler_params=pltpu.CompilerParams(
            dimension_semantics=("parallel",),
            vmem_limit_bytes=32 * 1024 * 1024,
        ),
        cost_estimate=pl.CostEstimate(
            flops=int(flops), transcendentals=0, bytes_accessed=int(bytes_accessed)),
    )(x, *weights)

    # (C_out, np_pad) -> (N, C_out, H, W_out)  (NCHW)
    out = out[:, :NP_out].reshape(C_out, N, H, W_out)
    return jnp.transpose(out, (1, 0, 2, 3))


def init_weights(key, m_dims, n_dims):
    """Kaiming-normal (mode='fan_out', gain=sqrt(2)) for bias-free 1x1 convs.
    Returned in torch orientation (C_out, C_in), ready for W @ h."""
    weights = []
    for f1, f2 in zip(m_dims, n_dims):
        key, sub = jax.random.split(key)
        std = jnp.sqrt(2.0 / f2)  # fan_out = f2 * 1 * 1
        weights.append(std * jax.random.normal(sub, (f2, f1), dtype=jnp.float32))
    return weights


def _reference(x_nchw, weights, k_size):
    """Matched-precision (bf16 matmul inputs, f32 accumulation) pure-JAX reference."""
    h = jnp.transpose(x_nchw, (0, 2, 3, 1)).astype(jnp.bfloat16)   # NHWC
    num_layers = len(weights)
    for l, w in enumerate(weights):
        h = jnp.dot(h, jnp.transpose(w).astype(jnp.bfloat16),
                    preferred_element_type=jnp.float32)
        h = jnp.maximum(h, LEAKY_SLOPE * h)
        if l + 1 < num_layers:
            h = h.astype(jnp.bfloat16)
    if k_size is not None:
        N, H, Wd, C = h.shape
        h = h.reshape(N, H, Wd // k_size, k_size, C).max(axis=3)
    return jnp.transpose(h, (0, 3, 1, 2))


if __name__ == "__main__":
    key = jax.random.PRNGKey(0)

    # PointNetConv(m=[4, 32], n=[32, 64], k_size=4)
    m_dims = [4, 32]
    n_dims = [32, 64]
    k_size = 4

    k_w, k_x = jax.random.split(key)
    weights = init_weights(k_w, m_dims, n_dims)

    N, C_in, H, W = 2, 4, 16, 16
    x = jax.random.normal(k_x, (N, C_in, H, W), dtype=jnp.float32)

    out = pointnet_conv(x, weights, k_size=k_size)
    out = jax.block_until_ready(out)

    ref = _reference(x, weights, k_size)
    assert out.shape == (N, n_dims[-1], H, W // k_size), out.shape
    max_err = float(jnp.max(jnp.abs(out - ref)))
    assert jnp.allclose(out, ref, atol=2e-3, rtol=2e-3), max_err

    print("KERNEL_OK")
</pallas_src>

<mosaic_0001>
module attributes {stable_mosaic.version = 11 : i64} {
  func.func @_pointnet_kernel(%arg0: i32, %arg1: memref<4x512xbf16, #tpu.memory_space<vmem>>, %arg2: memref<32x4xf32, #tpu.memory_space<vmem>>, %arg3: memref<64x32xf32, #tpu.memory_space<vmem>>, %arg4: memref<64x128xf32, #tpu.memory_space<vmem>>) attributes {dimension_semantics = [#tpu.dimension_semantics<parallel>], iteration_bounds = array<i64: 1>, scalar_prefetch = 0 : i64, scratch_operands = 0 : i64, tpu.core_type = #tpu.core_type<tc>, window_params = [{transform_indices = @transform_0, window_bounds = array<i64: 4, 512>}, {pipeline_mode = #tpu.pipeline_mode<synchronous>, transform_indices = @transform_1, window_bounds = array<i64: 32, 4>}, {pipeline_mode = #tpu.pipeline_mode<synchronous>, transform_indices = @transform_2, window_bounds = array<i64: 64, 32>}, {transform_indices = @transform_3, window_bounds = array<i64: 64, 128>}]} {
    %c0 = arith.constant 0 : index
    %c0_0 = arith.constant 0 : index
    %0 = vector.load %arg1[%c0, %c0_0] : memref<4x512xbf16, #tpu.memory_space<vmem>>, vector<4x512xbf16>
    %c0_1 = arith.constant 0 : index
    %c0_2 = arith.constant 0 : index
    %1 = vector.load %arg2[%c0_1, %c0_2] : memref<32x4xf32, #tpu.memory_space<vmem>>, vector<32x4xf32>
    %2 = arith.truncf %1 : vector<32x4xf32> to vector<32x4xbf16>
    %cst = arith.constant dense<0.000000e+00> : vector<32x512xf32>
    %3 = tpu.matmul %2, %0, %cst {dimension_numbers = #tpu.dot_dimension_numbers<[1], [0], [0], [1], [0, 0, 1, 1], [], []>} : vector<32x4xbf16>, vector<4x512xbf16>, vector<32x512xf32> -> vector<32x512xf32>
    %cst_3 = arith.constant 0.00999999977 : f32
    %4 = vector.broadcast %cst_3 : f32 to vector<32x512xf32>
    %5 = arith.mulf %4, %3 : vector<32x512xf32>
    %6 = arith.maximumf %3, %5 : vector<32x512xf32>
    %7 = arith.truncf %6 : vector<32x512xf32> to vector<32x512xbf16>
    %c0_4 = arith.constant 0 : index
    %c0_5 = arith.constant 0 : index
    %8 = vector.load %arg3[%c0_4, %c0_5] : memref<64x32xf32, #tpu.memory_space<vmem>>, vector<64x32xf32>
    %9 = arith.truncf %8 : vector<64x32xf32> to vector<64x32xbf16>
    %cst_6 = arith.constant dense<0.000000e+00> : vector<64x512xf32>
    %10 = tpu.matmul %9, %7, %cst_6 {dimension_numbers = #tpu.dot_dimension_numbers<[1], [0], [0], [1], [0, 0, 1, 1], [], []>} : vector<64x32xbf16>, vector<32x512xbf16>, vector<64x512xf32> -> vector<64x512xf32>
    %cst_7 = arith.constant 0.00999999977 : f32
    %11 = vector.broadcast %cst_7 : f32 to vector<64x512xf32>
    %12 = arith.mulf %11, %10 : vector<64x512xf32>
    %13 = arith.maximumf %10, %12 : vector<64x512xf32>
    %14 = vector.extract_strided_slice %13 {offsets = [0, 0], sizes = [64, 128], strides = [1, 1]} : vector<64x512xf32> to vector<64x128xf32>
    %15 = vector.extract_strided_slice %13 {offsets = [0, 128], sizes = [64, 128], strides = [1, 1]} : vector<64x512xf32> to vector<64x128xf32>
    %16 = arith.maximumf %14, %15 : vector<64x128xf32>
    %17 = vector.extract_strided_slice %13 {offsets = [0, 256], sizes = [64, 128], strides = [1, 1]} : vector<64x512xf32> to vector<64x128xf32>
    %18 = arith.maximumf %16, %17 : vector<64x128xf32>
    %19 = vector.extract_strided_slice %13 {offsets = [0, 384], sizes = [64, 128], strides = [1, 1]} : vector<64x512xf32> to vector<64x128xf32>
    %20 = arith.maximumf %18, %19 : vector<64x128xf32>
    %c0_8 = arith.constant 0 : index
    %c0_9 = arith.constant 0 : index
    %21 = vector.load %arg4[%c0_8, %c0_9] : memref<64x128xf32, #tpu.memory_space<vmem>>, vector<64x128xf32>
    tpu.vector_store %arg4[%c0_8, %c0_9], %20 {strides = array<i32>} : memref<64x128xf32, #tpu.memory_space<vmem>>, vector<64x128xf32>,
    return
  }
  func.func @transform_0(%arg0: i32) -> (i32, i32) {
    %c0_i32 = arith.constant 0 : i32
    %c0_i32_0 = arith.constant 0 : i32
    return %c0_i32, %arg0 : i32, i32
  }
  func.func @transform_1(%arg0: i32) -> (i32, i32) {
    %c0_i32 = arith.constant 0 : i32
    %c0_i32_0 = arith.constant 0 : i32
    %c0_i32_1 = arith.constant 0 : i32
    return %c0_i32, %c0_i32_0 : i32, i32
  }
  func.func @transform_2(%arg0: i32) -> (i32, i32) {
    %c0_i32 = arith.constant 0 : i32
    %c0_i32_0 = arith.constant 0 : i32
    %c0_i32_1 = arith.constant 0 : i32
    return %c0_i32, %c0_i32_0 : i32, i32
  }
  func.func @transform_3(%arg0: i32) -> (i32, i32) {
    %c0_i32 = arith.constant 0 : i32
    %c0_i32_0 = arith.constant 0 : i32
    return %c0_i32, %arg0 : i32, i32
  }
}

</mosaic_0001>

<llo_original>
// kernel: tpu_custom_call.1
$region0: #{tpu_custom_call.1}
  #allocation0 [shape = 'u32[]', space=smem, size = 0x4, offset = 0x4, fixed_abs, tag = 'smem constant byte address 0x4 - core index']
  #allocation1 [shape = 'u32[72,128]{1,0:T(1,128)}', space=vmem, size = 0x9000, scoped, tag = 'internal scratch']
  %s0 = inlined_call_operand.vmem [shape: bf16[4,512], index: 0, kind: input, shape index: {}]
  %s1 = inlined_call_operand.vmem [shape: f32[32,4], index: 1, kind: input, shape index: {}]
  %s2 = inlined_call_operand.vmem [shape: f32[64,32], index: 2, kind: input, shape index: {}]
  %s3 = inlined_call_operand.hbm [shape: f32[64,128], index: 3, kind: output, shape index: {}]
  %s4 = sld [smem:[#allocation0]]
  $region22: #{tpu_custom_call.1} parent=0
    _
  %s6 = ssub.s32 1, %s4
  %s7 = scalar_select 0, %s6, %s4
  $region1: #{tpu_custom_call.1} parent=0
    #allocation2 [shape = 'u8[32768]{0}', space=vmem, size = 0x8000, scoped, tag = 'output window, operand 0, single buffered']
    #allocation3 [shape = 's32[1]{0}', space=sflag, size = 0x4, scoped, tag = 'scoped memory for tpu_custom_call.1']
    %8 = vsyncpa [#allocation3], 0
    // Predicated region
    $region2: #{tpu_custom_call.1} parent=1 // pred_check
      _
    $region3: #{tpu_custom_call.1} parent=1 // pred_check_branch
      %10 = sbr.rel (0) target = $region5
    $region4: #{tpu_custom_call.1} parent=1 // pred_region
      _
    $region5: #{tpu_custom_call.1} parent=1 // pred_fallthru
      _
    // Predicated region
    $region6: #{tpu_custom_call.1} parent=1 // pred_check
      _
    $region7: #{tpu_custom_call.1} parent=1 // pred_check_branch
      %12 = sbr.rel (0) target = $region9
    $region8: #{tpu_custom_call.1} parent=1 // pred_region
      _
    $region9: #{tpu_custom_call.1} parent=1 // pred_fallthru
      _
    // Predicated region
    $region10: #{tpu_custom_call.1} parent=1 // pred_check
      _
    $region11: #{tpu_custom_call.1} parent=1 // pred_check_branch
      %14 = sbr.rel (0) target = $region13
    $region12: #{tpu_custom_call.1} parent=1 // pred_region
      _
    $region13: #{tpu_custom_call.1} parent=1 // pred_fallthru
      _
    %v16 = vld [vmem:[%s0] sm:$0xff]
    %v17 = vld [vmem:[%s1] sm:$0xff]
    %v18 = vld [vmem:[%s1 + $0x8] sm:$0xff]
    %v19 = vld [vmem:[%s1 + $0x10] sm:$0xff]
    %v20 = vld [vmem:[%s1 + $0x18] sm:$0xff]
    %v21 = vpack.c.bf16 %v18, %v17
    %v22 = vpack.c.bf16 %v20, %v19
    %24 = vst [vmem:[#allocation1] ss:$4 sm:$0xff] %v16
    %v25 = vld.sshfl [vmem:[#allocation1] sm:$0xff pattern:$0x73625140]
    %v26 = vld.sshfl [vmem:[#allocation1 + $0x8] sm:$0xff pattern:$0x73625140]
    %v27 = vld.sshfl [vmem:[#allocation1 + $0x10] sm:$0xff pattern:$0x73625140]
    %v28 = vld.sshfl [vmem:[#allocation1 + $0x18] sm:$0xff pattern:$0x73625140]
    %vm29 = vcmask 31744
    %v31 = vsel %vm29, %v21, 0
    %v34 = vsel %vm29, %v22, 0
    %vm36 = vcmask 1041408
    %v37 = vsel %vm36, %v25, 0
    %v39 = vsel %vm36, %v26, 0
    %v41 = vsel %vm36, %v27, 0
    %v43 = vsel %vm36, %v28, 0
    %45 = vmatpush.bf16.msra.mxu0 0
    %46 = vmatpush.bf16.msra.mxu0 0
    %47 = vmatpush.bf16.msra.mxu0 0
    %48 = vmatpush.bf16.msra.mxu0 0
    %49 = vmatpush.bf16.msra.mxu0 0
    %50 = vmatpush.bf16.msra.mxu0 0
    %51 = vmatpush.bf16.msra.mxu0 0
    %52 = vmatpush.bf16.msra.mxu0 %v37
    %53 = vmatmul.bf16.gmra.mxu0 %v31
    %v54 = vpop.f32.mrf.mxu0
    %v55 = vadd.f32 0.0, %v54
    %v56 = vpop.f32.mrf.mxu0
    %v57 = vadd.f32 0.0, %v56
    %58 = vmatmul.bf16.gmra.mxu0 %v34
    %v59 = vpop.f32.mrf.mxu0
    %v60 = vadd.f32 0.0, %v59
    %v61 = vpop.f32.mrf.mxu0
    %v62 = vadd.f32 0.0, %v61
    %63 = vdwg.mxu0
    %64 = vmatpush.bf16.msra.mxu0 0
    %65 = vmatpush.bf16.msra.mxu0 0
    %66 = vmatpush.bf16.msra.mxu0 0
    %67 = vmatpush.bf16.msra.mxu0 0
    %68 = vmatpush.bf16.msra.mxu0 0
    %69 = vmatpush.bf16.msra.mxu0 0
    %70 = vmatpush.bf16.msra.mxu0 0
    %71 = vmatpush.bf16.msra.mxu0 %v39
    %72 = vmatmul.bf16.gmra.mxu0 %v31
    %v73 = vpop.f32.mrf.mxu0
    %v74 = vadd.f32 0.0, %v73
    %v75 = vpop.f32.mrf.mxu0
    %v76 = vadd.f32 0.0, %v75
    %77 = vmatmul.bf16.gmra.mxu0 %v34
    %v78 = vpop.f32.mrf.mxu0
    %v79 = vadd.f32 0.0, %v78
    %v80 = vpop.f32.mrf.mxu0
    %v81 = vadd.f32 0.0, %v80
    %82 = vdwg.mxu0
    %83 = vmatpush.bf16.msra.mxu0 0
    %84 = vmatpush.bf16.msra.mxu0 0
    %85 = vmatpush.bf16.msra.mxu0 0
    %86 = vmatpush.bf16.msra.mxu0 0
    %87 = vmatpush.bf16.msra.mxu0 0
    %88 = vmatpush.bf16.msra.mxu0 0
    %89 = vmatpush.bf16.msra.mxu0 0
    %90 = vmatpush.bf16.msra.mxu0 %v41
    %91 = vmatmul.bf16.gmra.mxu0 %v31
    %v92 = vpop.f32.mrf.mxu0
    %v93 = vadd.f32 0.0, %v92
    %v94 = vpop.f32.mrf.mxu0
    %v95 = vadd.f32 0.0, %v94
    %96 = vmatmul.bf16.gmra.mxu0 %v34
    %v97 = vpop.f32.mrf.mxu0
    %v98 = vadd.f32 0.0, %v97
    %v99 = vpop.f32.mrf.mxu0
    %v100 = vadd.f32 0.0, %v99
    %101 = vdwg.mxu0
    %102 = vmatpush.bf16.msra.mxu0 0
    %103 = vmatpush.bf16.msra.mxu0 0
    %104 = vmatpush.bf16.msra.mxu0 0
    %105 = vmatpush.bf16.msra.mxu0 0
    %106 = vmatpush.bf16.msra.mxu0 0
    %107 = vmatpush.bf16.msra.mxu0 0
    %108 = vmatpush.bf16.msra.mxu0 0
    %109 = vmatpush.bf16.msra.mxu0 %v43
    %110 = vmatmul.bf16.gmra.mxu0 %v31
    %v111 = vpop.f32.mrf.mxu0
    %v112 = vadd.f32 0.0, %v111
    %v113 = vpop.f32.mrf.mxu0
    %v114 = vadd.f32 0.0, %v113
    %115 = vmatmul.bf16.gmra.mxu0 %v34
    %v116 = vpop.f32.mrf.mxu0
    %v117 = vadd.f32 0.0, %v116
    %v118 = vpop.f32.mrf.mxu0
    %v119 = vadd.f32 0.0, %v118
    %120 = vdwg.mxu0
    %v121 = vmul.f32 %v55, 0.01
    %v122 = vmul.f32 %v74, 0.01
    %v123 = vmul.f32 %v93, 0.01
    %v124 = vmul.f32 %v112, 0.01
    %v125 = vmul.f32 %v57, 0.01
    %v126 = vmul.f32 %v76, 0.01
    %v127 = vmul.f32 %v95, 0.01
    %v128 = vmul.f32 %v114, 0.01
    %v129 = vmul.f32 %v60, 0.01
    %v130 = vmul.f32 %v79, 0.01
    %v131 = vmul.f32 %v98, 0.01
    %v132 = vmul.f32 %v117, 0.01
    %v133 = vmul.f32 %v62, 0.01
    %v134 = vmul.f32 %v81, 0.01
    %v135 = vmul.f32 %v100, 0.01
    %v136 = vmul.f32 %v119, 0.01
    %v137 = vmax.f32 %v55, %v121
    %v138 = vmax.f32 %v74, %v122
    %v139 = vmax.f32 %v93, %v123
    %v140 = vmax.f32 %v112, %v124
    %v141 = vmax.f32 %v57, %v125
    %v142 = vmax.f32 %v76, %v126
    %v143 = vmax.f32 %v95, %v127
    %v144 = vmax.f32 %v114, %v128
    %v145 = vmax.f32 %v60, %v129
    %v146 = vmax.f32 %v79, %v130
    %v147 = vmax.f32 %v98, %v131
    %v148 = vmax.f32 %v117, %v132
    %v149 = vmax.f32 %v62, %v133
    %v150 = vmax.f32 %v81, %v134
    %v151 = vmax.f32 %v100, %v135
    %v152 = vmax.f32 %v119, %v136
    %v153 = vpack.c.bf16 %v141, %v137
    %v154 = vpack.c.bf16 %v142, %v138
    %v155 = vpack.c.bf16 %v143, %v139
    %v156 = vpack.c.bf16 %v144, %v140
    %v157 = vpack.c.bf16 %v149, %v145
    %v158 = vpack.c.bf16 %v150, %v146
    %v159 = vpack.c.bf16 %v151, %v147
    %v160 = vpack.c.bf16 %v152, %v148
    %v161 = vld [vmem:[%s2] sm:$0xff]
    %v162 = vld [vmem:[%s2 + $0x8] sm:$0xff]
    %v163 = vld [vmem:[%s2 + $0x10] sm:$0xff]
    %v164 = vld [vmem:[%s2 + $0x18] sm:$0xff]
    %v165 = vld [vmem:[%s2 + $0x20] sm:$0xff]
    %v166 = vld [vmem:[%s2 + $0x28] sm:$0xff]
    %v167 = vld [vmem:[%s2 + $0x30] sm:$0xff]
    %v168 = vld [vmem:[%s2 + $0x38] sm:$0xff]
    %v169 = vpack.c.bf16 %v162, %v161
    %v170 = vpack.c.bf16 %v164, %v163
    %v171 = vpack.c.bf16 %v166, %v165
    %v172 = vpack.c.bf16 %v168, %v167
    %vm173 = vcmask 261120
    %v175 = vsel %vm173, %v169, 0
    %v178 = vsel %vm173, %v170, 0
    %v181 = vsel %vm173, %v171, 0
    %v184 = vsel %vm173, %v172, 0
    %186 = vmatpush.bf16.msra.mxu0 0
    %187 = vmatpush.bf16.msra.mxu0 0
    %188 = vmatpush.bf16.msra.mxu0 0
    %189 = vmatpush.bf16.msra.mxu0 0
    %190 = vmatpush.bf16.msra.mxu0 0
    %191 = vmatpush.bf16.msra.mxu0 0
    %192 = vmatpush.bf16.msra.mxu0 %v157
    %193 = vmatpush.bf16.msra.mxu0 %v153
    %194 = vmatmul.bf16.gmra.mxu0 %v175
    %v195 = vpop.f32.mrf.mxu0
    %v196 = vadd.f32 0.0, %v195
    %v197 = vpop.f32.mrf.mxu0
    %v198 = vadd.f32 0.0, %v197
    %199 = vmatmul.bf16.gmra.mxu0 %v178
    %v200 = vpop.f32.mrf.mxu0
    %v201 = vadd.f32 0.0, %v200
    %v202 = vpop.f32.mrf.mxu0
    %v203 = vadd.f32 0.0, %v202
    %204 = vmatmul.bf16.gmra.mxu0 %v181
    %v205 = vpop.f32.mrf.mxu0
    %v206 = vadd.f32 0.0, %v205
    %v207 = vpop.f32.mrf.mxu0
    %v208 = vadd.f32 0.0, %v207
    %209 = vmatmul.bf16.gmra.mxu0 %v184
    %v210 = vpop.f32.mrf.mxu0
    %v211 = vadd.f32 0.0, %v210
    %v212 = vpop.f32.mrf.mxu0
    %v213 = vadd.f32 0.0, %v212
    %214 = vdwg.mxu0
    %215 = vmatpush.bf16.msra.mxu0 0
    %216 = vmatpush.bf16.msra.mxu0 0
    %217 = vmatpush.bf16.msra.mxu0 0
    %218 = vmatpush.bf16.msra.mxu0 0
    %219 = vmatpush.bf16.msra.mxu0 0
    %220 = vmatpush.bf16.msra.mxu0 0
    %221 = vmatpush.bf16.msra.mxu0 %v158
    %222 = vmatpush.bf16.msra.mxu0 %v154
    %223 = vmatmul.bf16.gmra.mxu0 %v175
    %v224 = vpop.f32.mrf.mxu0
    %v225 = vadd.f32 0.0, %v224
    %v226 = vpop.f32.mrf.mxu0
    %v227 = vadd.f32 0.0, %v226
    %228 = vmatmul.bf16.gmra.mxu0 %v178
    %v229 = vpop.f32.mrf.mxu0
    %v230 = vadd.f32 0.0, %v229
    %v231 = vpop.f32.mrf.mxu0
    %v232 = vadd.f32 0.0, %v231
    %233 = vmatmul.bf16.gmra.mxu0 %v181
    %v234 = vpop.f32.mrf.mxu0
    %v235 = vadd.f32 0.0, %v234
    %v236 = vpop.f32.mrf.mxu0
    %v237 = vadd.f32 0.0, %v236
    %238 = vmatmul.bf16.gmra.mxu0 %v184
    %v239 = vpop.f32.mrf.mxu0
    %v240 = vadd.f32 0.0, %v239
    %v241 = vpop.f32.mrf.mxu0
    %v242 = vadd.f32 0.0, %v241
    %243 = vdwg.mxu0
    %244 = vmatpush.bf16.msra.mxu0 0
    %245 = vmatpush.bf16.msra.mxu0 0
    %246 = vmatpush.bf16.msra.mxu0 0
    %247 = vmatpush.bf16.msra.mxu0 0
    %248 = vmatpush.bf16.msra.mxu0 0
    %249 = vmatpush.bf16.msra.mxu0 0
    %250 = vmatpush.bf16.msra.mxu0 %v159
    %251 = vmatpush.bf16.msra.mxu0 %v155
    %252 = vmatmul.bf16.gmra.mxu0 %v175
    %v253 = vpop.f32.mrf.mxu0
    %v254 = vadd.f32 0.0, %v253
    %v255 = vpop.f32.mrf.mxu0
    %v256 = vadd.f32 0.0, %v255
    %257 = vmatmul.bf16.gmra.mxu0 %v178
    %v258 = vpop.f32.mrf.mxu0
    %v259 = vadd.f32 0.0, %v258
    %v260 = vpop.f32.mrf.mxu0
    %v261 = vadd.f32 0.0, %v260
    %262 = vmatmul.bf16.gmra.mxu0 %v181
    %v263 = vpop.f32.mrf.mxu0
    %v264 = vadd.f32 0.0, %v263
    %v265 = vpop.f32.mrf.mxu0
    %v266 = vadd.f32 0.0, %v265
    %267 = vmatmul.bf16.gmra.mxu0 %v184
    %v268 = vpop.f32.mrf.mxu0
    %v269 = vadd.f32 0.0, %v268
    %v270 = vpop.f32.mrf.mxu0
    %v271 = vadd.f32 0.0, %v270
    %272 = vdwg.mxu0
    %273 = vmatpush.bf16.msra.mxu0 0
    %274 = vmatpush.bf16.msra.mxu0 0
    %275 = vmatpush.bf16.msra.mxu0 0
    %276 = vmatpush.bf16.msra.mxu0 0
    %277 = vmatpush.bf16.msra.mxu0 0
    %278 = vmatpush.bf16.msra.mxu0 0
    %279 = vmatpush.bf16.msra.mxu0 %v160
    %280 = vmatpush.bf16.msra.mxu0 %v156
    %281 = vmatmul.bf16.gmra.mxu0 %v175
    %v282 = vpop.f32.mrf.mxu0
    %v283 = vadd.f32 0.0, %v282
    %v284 = vpop.f32.mrf.mxu0
    %v285 = vadd.f32 0.0, %v284
    %286 = vmatmul.bf16.gmra.mxu0 %v178
    %v287 = vpop.f32.mrf.mxu0
    %v288 = vadd.f32 0.0, %v287
    %v289 = vpop.f32.mrf.mxu0
    %v290 = vadd.f32 0.0, %v289
    %291 = vmatmul.bf16.gmra.mxu0 %v181
    %v292 = vpop.f32.mrf.mxu0
    %v293 = vadd.f32 0.0, %v292
    %v294 = vpop.f32.mrf.mxu0
    %v295 = vadd.f32 0.0, %v294
    %296 = vmatmul.bf16.gmra.mxu0 %v184
    %v297 = vpop.f32.mrf.mxu0
    %v298 = vadd.f32 0.0, %v297
    %v299 = vpop.f32.mrf.mxu0
    %v300 = vadd.f32 0.0, %v299
    %301 = vdwg.mxu0
    %v302 = vmul.f32 %v196, 0.01
    %v303 = vmul.f32 %v225, 0.01
    %v304 = vmul.f32 %v254, 0.01
    %v305 = vmul.f32 %v283, 0.01
    %v306 = vmul.f32 %v198, 0.01
    %v307 = vmul.f32 %v227, 0.01
    %v308 = vmul.f32 %v256, 0.01
    %v309 = vmul.f32 %v285, 0.01
    %v310 = vmul.f32 %v201, 0.01
    %v311 = vmul.f32 %v230, 0.01
    %v312 = vmul.f32 %v259, 0.01
    %v313 = vmul.f32 %v288, 0.01
    %v314 = vmul.f32 %v203, 0.01
    %v315 = vmul.f32 %v232, 0.01
    %v316 = vmul.f32 %v261, 0.01
    %v317 = vmul.f32 %v290, 0.01
    %v318 = vmul.f32 %v206, 0.01
    %v319 = vmul.f32 %v235, 0.01
    %v320 = vmul.f32 %v264, 0.01
    %v321 = vmul.f32 %v293, 0.01
    %v322 = vmul.f32 %v208, 0.01
    %v323 = vmul.f32 %v237, 0.01
    %v324 = vmul.f32 %v266, 0.01
    %v325 = vmul.f32 %v295, 0.01
    %v326 = vmul.f32 %v211, 0.01
    %v327 = vmul.f32 %v240, 0.01
    %v328 = vmul.f32 %v269, 0.01
    %v329 = vmul.f32 %v298, 0.01
    %v330 = vmul.f32 %v213, 0.01
    %v331 = vmul.f32 %v242, 0.01
    %v332 = vmul.f32 %v271, 0.01
    %v333 = vmul.f32 %v300, 0.01
    %v334 = vmax.f32 %v196, %v302
    %v335 = vmax.f32 %v225, %v303
    %v336 = vmax.f32 %v254, %v304
    %v337 = vmax.f32 %v283, %v305
    %v338 = vmax.f32 %v198, %v306
    %v339 = vmax.f32 %v227, %v307
    %v340 = vmax.f32 %v256, %v308
    %v341 = vmax.f32 %v285, %v309
    %v342 = vmax.f32 %v201, %v310
    %v343 = vmax.f32 %v230, %v311
    %v344 = vmax.f32 %v259, %v312
    %v345 = vmax.f32 %v288, %v313
    %v346 = vmax.f32 %v203, %v314
    %v347 = vmax.f32 %v232, %v315
    %v348 = vmax.f32 %v261, %v316
    %v349 = vmax.f32 %v290, %v317
    %v350 = vmax.f32 %v206, %v318
    %v351 = vmax.f32 %v235, %v319
    %v352 = vmax.f32 %v264, %v320
    %v353 = vmax.f32 %v293, %v321
    %v354 = vmax.f32 %v208, %v322
    %v355 = vmax.f32 %v237, %v323
    %v356 = vmax.f32 %v266, %v324
    %v357 = vmax.f32 %v295, %v325
    %v358 = vmax.f32 %v211, %v326
    %v359 = vmax.f32 %v240, %v327
    %v360 = vmax.f32 %v269, %v328
    %v361 = vmax.f32 %v298, %v329
    %v362 = vmax.f32 %v213, %v330
    %v363 = vmax.f32 %v242, %v331
    %v364 = vmax.f32 %v271, %v332
    %v365 = vmax.f32 %v300, %v333
    %v366 = vmax.f32 %v334, %v335
    %v367 = vmax.f32 %v338, %v339
    %v368 = vmax.f32 %v342, %v343
    %v369 = vmax.f32 %v346, %v347
    %v370 = vmax.f32 %v350, %v351
    %v371 = vmax.f32 %v354, %v355
    %v372 = vmax.f32 %v358, %v359
    %v373 = vmax.f32 %v362, %v363
    %v374 = vmax.f32 %v366, %v336
    %v375 = vmax.f32 %v367, %v340
    %v376 = vmax.f32 %v368, %v344
    %v377 = vmax.f32 %v369, %v348
    %v378 = vmax.f32 %v370, %v352
    %v379 = vmax.f32 %v371, %v356
    %v380 = vmax.f32 %v372, %v360
    %v381 = vmax.f32 %v373, %v364
    %v382 = vmax.f32 %v374, %v337
    %v383 = vmax.f32 %v375, %v341
    %v384 = vmax.f32 %v376, %v345
    %v385 = vmax.f32 %v377, %v349
    %v386 = vmax.f32 %v378, %v353
    %v387 = vmax.f32 %v379, %v357
    %v388 = vmax.f32 %v380, %v361
    %v389 = vmax.f32 %v381, %v365
    %390 = vst [vmem:[#allocation2] sm:$0xff] %v382
    %391 = vst [vmem:[#allocation2 + $0x8] sm:$0xff] %v383
    %392 = vst [vmem:[#allocation2 + $0x10] sm:$0xff] %v384
    %393 = vst [vmem:[#allocation2 + $0x18] sm:$0xff] %v385
    %394 = vst [vmem:[#allocation2 + $0x20] sm:$0xff] %v386
    %395 = vst [vmem:[#allocation2 + $0x28] sm:$0xff] %v387
    %396 = vst [vmem:[#allocation2 + $0x30] sm:$0xff] %v388
    %397 = vst [vmem:[#allocation2 + $0x38] sm:$0xff] %v389
    // Predicated region
    $region14: #{tpu_custom_call.1} parent=1 // pred_check
      _
    $region15: #{tpu_custom_call.1} parent=1 // pred_check_branch
      %399 = sbr.rel (0) target = $region17
    $region16: #{tpu_custom_call.1} parent=1 // pred_region
      %401 = vsyncadd [#allocation3], 0
      %s402 = sshll.u32 [#allocation2], 4
      %s403 = int_to_ptr.vmem [resolvable:$true] %s402
      %s404 = sshll.u32 %s3, 4
      %s405 = int_to_ptr.hbm [resolvable:$true] %s404
      %410 = dma.vmem_to_hbm [thread:$0]  %s403, 1024, %s405, [#allocation3], 128, 128, 8
    $region17: #{tpu_custom_call.1} parent=1 // pred_fallthru
      _
    // Predicated region
    $region18: #{tpu_custom_call.1} parent=1 // pred_check
      _
    $region19: #{tpu_custom_call.1} parent=1 // pred_check_branch
      %412 = sbr.rel (0) target = $region21
    $region20: #{tpu_custom_call.1} parent=1 // pred_region
      %414 = dma.done [#allocation3], 1024
    $region21: #{tpu_custom_call.1} parent=1 // pred_fallthru
      _
    %415 = vsyncpa [#allocation3], 1

</llo_original>
